<compile_context>
chip_gen: v7x
topology: tpu7x:2x2x1
jax: 0.10.0
libtpu: 0.0.40
codegen_flags: <defaults>
</compile_context>

<pallas_src>
import functools

import jax
import jax.numpy as jnp
from jax.experimental import pallas as pl
from jax.experimental.pallas import tpu as pltpu


def _lstm_recurrence_kernel(gx_ref, whh_ref, hc0_ref, out_ref, state_ref,
                            state_scr, *, hidden_size, block_t, seq_len,
                            mask_tail):
    """One grid step == one block of `block_t` timesteps.

    gx_ref    : (TB, 4H) precomputed x_t @ W_ih^T + b (bias already folded)
    whh_ref   : (H, 4H)  W_hh^T, constant block index -> VMEM resident
    hc0_ref   : (2, H)   initial [h0 ; c0]
    out_ref   : (TB, H)  per-step LSTM outputs h_t for this block
    state_ref : (2, H)   final [h ; c] (constant index, flushed once)
    state_scr : (2, H)   VMEM scratch carrying [h ; c] across grid steps
    """
    H = hidden_size
    b = pl.program_id(0)

    @pl.when(b == 0)
    def _():
        state_scr[...] = hc0_ref[...]

    h = state_scr[0:1, :]                      # (1, H)
    c = state_scr[1:2, :]                      # (1, H)
    w_hh = whh_ref[...]                        # (H, 4H), loaded once per block

    # Statically unrolled inner loop over the timesteps of this block.
    for j in range(block_t):
        # Serial half only: (1, H) @ (H, 4H) on the MXU + precomputed slab row.
        gates = gx_ref[j:j + 1, :] + jnp.dot(
            h, w_hh, preferred_element_type=jnp.float32)        # (1, 4H)

        # Transcendentals only where needed (gate order i, f, g, o).
        if_g = jax.nn.sigmoid(gates[:, 0:2 * H])                # i | f lanes
        i_g = if_g[:, 0:H]
        f_g = if_g[:, H:2 * H]
        g_g = jnp.tanh(gates[:, 2 * H:3 * H])
        o_g = jax.nn.sigmoid(gates[:, 3 * H:4 * H])

        c_new = f_g * c + i_g * g_g
        h_new = o_g * jnp.tanh(c_new)

        if mask_tail:
            # Freeze the state on padded tail steps (t >= real sequence length).
            valid = (b * block_t + j) < seq_len
            h_new = jnp.where(valid, h_new, h)
            c_new = jnp.where(valid, c_new, c)

        out_ref[j:j + 1, :] = h_new            # row store into the VMEM block
        h, c = h_new, c_new

    state_scr[0:1, :] = h
    state_scr[1:2, :] = c
    # Constant-index output block: last write wins, flushed to HBM once.
    state_ref[...] = state_scr[...]


def prepare_encoder_params(emb, w_ih, w_hh, b_ih, b_hh):
    """One-time parameter prep (transposes / bias fusion). Reuse per forward."""
    H = emb.shape[1]
    emb_f = jnp.asarray(emb, jnp.float32)                       # (V, H)
    w_ih_t = jnp.asarray(w_ih, jnp.float32).T                   # (H, 4H)
    w_hh_t = jnp.asarray(w_hh, jnp.float32).T                   # (H, 4H)
    b_fused = (jnp.asarray(b_ih, jnp.float32)
               + jnp.asarray(b_hh, jnp.float32)).reshape(1, 4 * H)
    return emb_f, w_ih_t, w_hh_t, b_fused


@jax.jit
def encoder_rnn_sequence(tokens, emb, w_ih_t, w_hh_t, b_fused, hidden, cell):
    """Run the EncoderRNN over a whole token sequence.

    tokens: (T,) int32.  Returns (outputs (T, H), h_T (1, H), c_T (1, H)).
    A T=1 call reproduces EncoderRNN.forward exactly.
    """
    V, H = emb.shape
    T = tokens.shape[0]

    # ---- time-parallel half, hoisted out of the recurrence ----------------
    # One batched gather + one (T, H) @ (H, 4H) MXU matmul, bias folded in.
    tok = jnp.clip(jnp.asarray(tokens, jnp.int32), 0, V - 1)    # no OOB reads
    x = jnp.take(emb, tok, axis=0)                              # (T, H)
    gates_x = x @ w_ih_t + b_fused                              # (T, 4H)

    # ---- block timesteps for the serial recurrence ------------------------
    TB = min(32, -(-T // 8) * 8)          # multiple of 8, <= 32
    T_pad = -(-T // TB) * TB
    if T_pad != T:
        gates_x = jnp.pad(gates_x, ((0, T_pad - T), (0, 0)))
    nb = T_pad // TB

    hc0 = jnp.concatenate(
        [jnp.asarray(hidden, jnp.float32).reshape(1, H),
         jnp.asarray(cell, jnp.float32).reshape(1, H)], axis=0)  # (2, H)

    kernel = functools.partial(
        _lstm_recurrence_kernel, hidden_size=H, block_t=TB,
        seq_len=T, mask_tail=(T_pad != T))

    grid_spec = pltpu.PrefetchScalarGridSpec(
        num_scalar_prefetch=0,
        grid=(nb,),
        in_specs=[
            # per-block slab of precomputed input gates
            pl.BlockSpec((TB, 4 * H), lambda b: (b, 0)),
            # W_hh^T / initial state: constant block index -> VMEM resident
            pl.BlockSpec((H, 4 * H), lambda b: (0, 0)),
            pl.BlockSpec((2, H), lambda b: (0, 0)),
        ],
        out_specs=(
            pl.BlockSpec((TB, H), lambda b: (b, 0)),   # per-step h_t slab
            pl.BlockSpec((2, H), lambda b: (0, 0)),    # final [h ; c]
        ),
        scratch_shapes=[pltpu.VMEM((2, H), jnp.float32)],
    )

    outs, state = pl.pallas_call(
        kernel,
        out_shape=(
            jax.ShapeDtypeStruct((T_pad, H), jnp.float32),
            jax.ShapeDtypeStruct((2, H), jnp.float32),
        ),
        grid_spec=grid_spec,
        compiler_params=pltpu.CompilerParams(
            dimension_semantics=("arbitrary",)),   # time recurrence is serial
    )(gates_x, w_hh_t, hc0)

    return outs[:T], state[0:1, :], state[1:2, :]


def encoder_rnn_forward(tok, emb, w_ih_t, w_hh_t, b_fused, hidden, cell):
    """Exact EncoderRNN.forward semantics: one token, batch=1.

    Returns (output, hidden, cell), each of shape (1, 1, H) like PyTorch.
    """
    H = emb.shape[1]
    outs, h1, c1 = encoder_rnn_sequence(
        jnp.asarray(tok, jnp.int32).reshape((1,)),
        emb, w_ih_t, w_hh_t, b_fused, hidden, cell)
    return outs.reshape(1, 1, H), h1.reshape(1, 1, H), c1.reshape(1, 1, H)


def _reference_step(tok, emb, w_ih, w_hh, b_ih, b_hh, h, c):
    """Plain-JAX reference of one PyTorch LSTM cell step."""
    H = emb.shape[1]
    x = emb[tok].reshape(1, H)
    h = h.reshape(1, H)
    c = c.reshape(1, H)
    gates = x @ w_ih.T + b_ih + h @ w_hh.T + b_hh
    i = jax.nn.sigmoid(gates[:, 0 * H:1 * H])
    f = jax.nn.sigmoid(gates[:, 1 * H:2 * H])
    g = jnp.tanh(gates[:, 2 * H:3 * H])
    o = jax.nn.sigmoid(gates[:, 3 * H:4 * H])
    c_new = f * c + i * g
    h_new = o * jnp.tanh(c_new)
    return h_new, c_new


if __name__ == "__main__":
    VOCAB = 64     # input_size (vocabulary)
    HIDDEN = 32    # hidden_size
    SEQ = 40       # demo sequence length (exercises multi-block grid + tail mask)

    key = jax.random.PRNGKey(0)
    k_emb, k_wih, k_whh, k_bih, k_bhh, k_tok = jax.random.split(key, 6)

    # Deterministic synthetic parameters (shapes per nn.Embedding / nn.LSTM).
    emb = jax.random.normal(k_emb, (VOCAB, HIDDEN), jnp.float32)
    bound = 1.0 / jnp.sqrt(HIDDEN)
    w_ih = jax.random.uniform(k_wih, (4 * HIDDEN, HIDDEN), jnp.float32, -bound, bound)
    w_hh = jax.random.uniform(k_whh, (4 * HIDDEN, HIDDEN), jnp.float32, -bound, bound)
    b_ih = jax.random.uniform(k_bih, (4 * HIDDEN,), jnp.float32, -bound, bound)
    b_hh = jax.random.uniform(k_bhh, (4 * HIDDEN,), jnp.float32, -bound, bound)

    # Hoisted one-time prep (no per-call transposes / bias adds).
    emb_f, w_ih_t, w_hh_t, b_fused = prepare_encoder_params(
        emb, w_ih, w_hh, b_ih, b_hh)

    h0 = jnp.zeros((1, 1, HIDDEN), jnp.float32)   # initHidden
    c0 = jnp.zeros((1, 1, HIDDEN), jnp.float32)   # initCell

    # ---- single-token forward: exact module semantics --------------------
    tok = jax.random.randint(k_tok, (), 0, VOCAB, jnp.int32)
    out1, h1, c1 = encoder_rnn_forward(tok, emb_f, w_ih_t, w_hh_t, b_fused, h0, c0)
    jax.block_until_ready((out1, h1, c1))

    rh, rc = _reference_step(int(tok), emb, w_ih, w_hh, b_ih, b_hh, h0, c0)
    assert jnp.allclose(out1.reshape(1, HIDDEN), rh, atol=1e-5)
    assert jnp.allclose(h1.reshape(1, HIDDEN), rh, atol=1e-5)
    assert jnp.allclose(c1.reshape(1, HIDDEN), rc, atol=1e-5)

    # ---- whole sequence: blocked grid, hoisted input projection ----------
    tokens = jax.random.randint(k_tok, (SEQ,), 0, VOCAB, jnp.int32)
    outs, hT, cT = encoder_rnn_sequence(
        tokens, emb_f, w_ih_t, w_hh_t, b_fused, h0, c0)
    jax.block_until_ready((outs, hT, cT))

    h_ref, c_ref = h0, c0
    ref_outs = []
    for s in range(SEQ):
        h_ref, c_ref = _reference_step(int(tokens[s]), emb, w_ih, w_hh,
                                       b_ih, b_hh, h_ref, c_ref)
        ref_outs.append(h_ref)
    ref_outs = jnp.concatenate(ref_outs, axis=0)
    assert jnp.allclose(outs, ref_outs, atol=1e-5)
    assert jnp.allclose(hT, h_ref, atol=1e-5)
    assert jnp.allclose(cT, c_ref, atol=1e-5)

    print("KERNEL_OK")
</pallas_src>

<mosaic_0001>
module attributes {stable_mosaic.version = 11 : i64} {
  func.func @_lstm_recurrence_kernel(%arg0: i32, %arg1: memref<8x128xf32, #tpu.memory_space<vmem>>, %arg2: memref<32x128xf32, #tpu.memory_space<vmem>>, %arg3: memref<2x32xf32, #tpu.memory_space<vmem>>, %arg4: memref<8x32xf32, #tpu.memory_space<vmem>>, %arg5: memref<2x32xf32, #tpu.memory_space<vmem>>, %arg6: memref<2x32xf32, #tpu.memory_space<vmem>>) attributes {dimension_semantics = [#tpu.dimension_semantics<arbitrary>], iteration_bounds = array<i64: 1>, scalar_prefetch = 0 : i64, scratch_operands = 1 : i64, tpu.core_type = #tpu.core_type<tc>, window_params = [{transform_indices = @transform_0, window_bounds = array<i64: 8, 128>}, {pipeline_mode = #tpu.pipeline_mode<synchronous>, transform_indices = @transform_1, window_bounds = array<i64: 32, 128>}, {pipeline_mode = #tpu.pipeline_mode<synchronous>, transform_indices = @transform_2, window_bounds = array<i64: 2, 32>}, {transform_indices = @transform_3, window_bounds = array<i64: 8, 32>}, {pipeline_mode = #tpu.pipeline_mode<synchronous>, transform_indices = @transform_4, window_bounds = array<i64: 2, 32>}]} {
    %c0_i32 = arith.constant 0 : i32
    %0 = arith.cmpi eq, %arg0, %c0_i32 : i32
    %1 = arith.extui %0 : i1 to i32
    %c0_i32_0 = arith.constant 0 : i32
    %2 = arith.cmpi ne, %1, %c0_i32_0 : i32
    scf.if %2 {
      %c0_78 = arith.constant 0 : index
      %c0_79 = arith.constant 0 : index
      %250 = vector.load %arg3[%c0_78, %c0_79] : memref<2x32xf32, #tpu.memory_space<vmem>>, vector<2x32xf32>
      %c0_80 = arith.constant 0 : index
      %c0_81 = arith.constant 0 : index
      %251 = vector.load %arg6[%c0_80, %c0_81] : memref<2x32xf32, #tpu.memory_space<vmem>>, vector<2x32xf32>
      tpu.vector_store %arg6[%c0_80, %c0_81], %250 {strides = array<i32>} : memref<2x32xf32, #tpu.memory_space<vmem>>, vector<2x32xf32>,
    } else {
    }
    %c0 = arith.constant 0 : index
    %c0_1 = arith.constant 0 : index
    %3 = vector.load %arg6[%c0, %c0_1] : memref<2x32xf32, #tpu.memory_space<vmem>>, vector<1x32xf32>
    %c1 = arith.constant 1 : index
    %c0_2 = arith.constant 0 : index
    %4 = vector.load %arg6[%c1, %c0_2] : memref<2x32xf32, #tpu.memory_space<vmem>>, vector<1x32xf32>
    %c0_3 = arith.constant 0 : index
    %c0_4 = arith.constant 0 : index
    %5 = vector.load %arg2[%c0_3, %c0_4] : memref<32x128xf32, #tpu.memory_space<vmem>>, vector<32x128xf32>
    %c0_5 = arith.constant 0 : index
    %c0_6 = arith.constant 0 : index
    %6 = vector.load %arg1[%c0_5, %c0_6] : memref<8x128xf32, #tpu.memory_space<vmem>>, vector<1x128xf32>
    %cst = arith.constant dense<0.000000e+00> : vector<1x128xf32>
    %7 = tpu.matmul %3, %5, %cst {dimension_numbers = #tpu.dot_dimension_numbers<[1], [0], [0], [1], [0, 0, 1, 1], [], []>} : vector<1x32xf32>, vector<32x128xf32>, vector<1x128xf32> -> vector<1x128xf32>
    %8 = arith.addf %6, %7 : vector<1x128xf32>
    %9 = vector.extract_strided_slice %8 {offsets = [0, 0], sizes = [1, 64], strides = [1, 1]} : vector<1x128xf32> to vector<1x64xf32>
    %10 = arith.negf %9 : vector<1x64xf32>
    %11 = math.exp %10 : vector<1x64xf32>
    %cst_7 = arith.constant 1.000000e+00 : f32
    %12 = vector.broadcast %cst_7 : f32 to vector<1x64xf32>
    %13 = arith.addf %12, %11 : vector<1x64xf32>
    %14 = arith.divf %12, %13 : vector<1x64xf32>
    %15 = vector.extract_strided_slice %14 {offsets = [0, 0], sizes = [1, 32], strides = [1, 1]} : vector<1x64xf32> to vector<1x32xf32>
    %16 = vector.extract_strided_slice %14 {offsets = [0, 32], sizes = [1, 32], strides = [1, 1]} : vector<1x64xf32> to vector<1x32xf32>
    %17 = vector.extract_strided_slice %8 {offsets = [0, 64], sizes = [1, 32], strides = [1, 1]} : vector<1x128xf32> to vector<1x32xf32>
    %18 = math.tanh %17 : vector<1x32xf32>
    %19 = vector.extract_strided_slice %8 {offsets = [0, 96], sizes = [1, 32], strides = [1, 1]} : vector<1x128xf32> to vector<1x32xf32>
    %20 = arith.negf %19 : vector<1x32xf32>
    %21 = math.exp %20 : vector<1x32xf32>
    %cst_8 = arith.constant 1.000000e+00 : f32
    %22 = vector.broadcast %cst_8 : f32 to vector<1x32xf32>
    %23 = arith.addf %22, %21 : vector<1x32xf32>
    %24 = arith.divf %22, %23 : vector<1x32xf32>
    %25 = arith.mulf %16, %4 : vector<1x32xf32>
    %26 = arith.mulf %15, %18 : vector<1x32xf32>
    %27 = arith.addf %25, %26 : vector<1x32xf32>
    %28 = math.tanh %27 : vector<1x32xf32>
    %29 = arith.mulf %24, %28 : vector<1x32xf32>
    %c8_i32 = arith.constant 8 : i32
    %30 = arith.muli %arg0, %c8_i32 : i32
    %c0_i32_9 = arith.constant 0 : i32
    %31 = arith.addi %30, %c0_i32_9 : i32
    %c1_i32 = arith.constant 1 : i32
    %32 = arith.cmpi slt, %31, %c1_i32 : i32
    %33 = arith.select %32, %29, %3 : vector<1x32xf32>
    %34 = arith.select %32, %27, %4 : vector<1x32xf32>
    %c0_10 = arith.constant 0 : index
    %c0_11 = arith.constant 0 : index
    %35 = vector.load %arg4[%c0_10, %c0_11] : memref<8x32xf32, #tpu.memory_space<vmem>>, vector<1x32xf32>
    tpu.vector_store %arg4[%c0_10, %c0_11], %33 {strides = array<i32>} : memref<8x32xf32, #tpu.memory_space<vmem>>, vector<1x32xf32>,
    %c1_12 = arith.constant 1 : index
    %c0_13 = arith.constant 0 : index
    %36 = vector.load %arg1[%c1_12, %c0_13] : memref<8x128xf32, #tpu.memory_space<vmem>>, vector<1x128xf32>
    %cst_14 = arith.constant dense<0.000000e+00> : vector<1x128xf32>
    %37 = tpu.matmul %33, %5, %cst_14 {dimension_numbers = #tpu.dot_dimension_numbers<[1], [0], [0], [1], [0, 0, 1, 1], [], []>} : vector<1x32xf32>, vector<32x128xf32>, vector<1x128xf32> -> vector<1x128xf32>
    %38 = arith.addf %36, %37 : vector<1x128xf32>
    %39 = vector.extract_strided_slice %38 {offsets = [0, 0], sizes = [1, 64], strides = [1, 1]} : vector<1x128xf32> to vector<1x64xf32>
    %40 = arith.negf %39 : vector<1x64xf32>
    %41 = math.exp %40 : vector<1x64xf32>
    %cst_15 = arith.constant 1.000000e+00 : f32
    %42 = vector.broadcast %cst_15 : f32 to vector<1x64xf32>
    %43 = arith.addf %42, %41 : vector<1x64xf32>
    %44 = arith.divf %42, %43 : vector<1x64xf32>
    %45 = vector.extract_strided_slice %44 {offsets = [0, 0], sizes = [1, 32], strides = [1, 1]} : vector<1x64xf32> to vector<1x32xf32>
    %46 = vector.extract_strided_slice %44 {offsets = [0, 32], sizes = [1, 32], strides = [1, 1]} : vector<1x64xf32> to vector<1x32xf32>
    %47 = vector.extract_strided_slice %38 {offsets = [0, 64], sizes = [1, 32], strides = [1, 1]} : vector<1x128xf32> to vector<1x32xf32>
    %48 = math.tanh %47 : vector<1x32xf32>
    %49 = vector.extract_strided_slice %38 {offsets = [0, 96], sizes = [1, 32], strides = [1, 1]} : vector<1x128xf32> to vector<1x32xf32>
    %50 = arith.negf %49 : vector<1x32xf32>
    %51 = math.exp %50 : vector<1x32xf32>
    %cst_16 = arith.constant 1.000000e+00 : f32
    %52 = vector.broadcast %cst_16 : f32 to vector<1x32xf32>
    %53 = arith.addf %52, %51 : vector<1x32xf32>
    %54 = arith.divf %52, %53 : vector<1x32xf32>
    %55 = arith.mulf %46, %34 : vector<1x32xf32>
    %56 = arith.mulf %45, %48 : vector<1x32xf32>
    %57 = arith.addf %55, %56 : vector<1x32xf32>
    %58 = math.tanh %57 : vector<1x32xf32>
    %59 = arith.mulf %54, %58 : vector<1x32xf32>
    %c8_i32_17 = arith.constant 8 : i32
    %60 = arith.muli %arg0, %c8_i32_17 : i32
    %c1_i32_18 = arith.constant 1 : i32
    %61 = arith.addi %60, %c1_i32_18 : i32
    %c1_i32_19 = arith.constant 1 : i32
    %62 = arith.cmpi slt, %61, %c1_i32_19 : i32
    %63 = arith.select %62, %59, %33 : vector<1x32xf32>
    %64 = arith.select %62, %57, %34 : vector<1x32xf32>
    %c1_20 = arith.constant 1 : index
    %c0_21 = arith.constant 0 : index
    %65 = vector.load %arg4[%c1_20, %c0_21] : memref<8x32xf32, #tpu.memory_space<vmem>>, vector<1x32xf32>
    tpu.vector_store %arg4[%c1_20, %c0_21], %63 {strides = array<i32>} : memref<8x32xf32, #tpu.memory_space<vmem>>, vector<1x32xf32>,
    %c2 = arith.constant 2 : index
    %c0_22 = arith.constant 0 : index
    %66 = vector.load %arg1[%c2, %c0_22] : memref<8x128xf32, #tpu.memory_space<vmem>>, vector<1x128xf32>
    %cst_23 = arith.constant dense<0.000000e+00> : vector<1x128xf32>
    %67 = tpu.matmul %63, %5, %cst_23 {dimension_numbers = #tpu.dot_dimension_numbers<[1], [0], [0], [1], [0, 0, 1, 1], [], []>} : vector<1x32xf32>, vector<32x128xf32>, vector<1x128xf32> -> vector<1x128xf32>
    %68 = arith.addf %66, %67 : vector<1x128xf32>
    %69 = vector.extract_strided_slice %68 {offsets = [0, 0], sizes = [1, 64], strides = [1, 1]} : vector<1x128xf32> to vector<1x64xf32>
    %70 = arith.negf %69 : vector<1x64xf32>
    %71 = math.exp %70 : vector<1x64xf32>
    %cst_24 = arith.constant 1.000000e+00 : f32
    %72 = vector.broadcast %cst_24 : f32 to vector<1x64xf32>
    %73 = arith.addf %72, %71 : vector<1x64xf32>
    %74 = arith.divf %72, %73 : vector<1x64xf32>
    %75 = vector.extract_strided_slice %74 {offsets = [0, 0], sizes = [1, 32], strides = [1, 1]} : vector<1x64xf32> to vector<1x32xf32>
    %76 = vector.extract_strided_slice %74 {offsets = [0, 32], sizes = [1, 32], strides = [1, 1]} : vector<1x64xf32> to vector<1x32xf32>
    %77 = vector.extract_strided_slice %68 {offsets = [0, 64], sizes = [1, 32], strides = [1, 1]} : vector<1x128xf32> to vector<1x32xf32>
    %78 = math.tanh %77 : vector<1x32xf32>
    %79 = vector.extract_strided_slice %68 {offsets = [0, 96], sizes = [1, 32], strides = [1, 1]} : vector<1x128xf32> to vector<1x32xf32>
    %80 = arith.negf %79 : vector<1x32xf32>
    %81 = math.exp %80 : vector<1x32xf32>
    %cst_25 = arith.constant 1.000000e+00 : f32
    %82 = vector.broadcast %cst_25 : f32 to vector<1x32xf32>
    %83 = arith.addf %82, %81 : vector<1x32xf32>
    %84 = arith.divf %82, %83 : vector<1x32xf32>
    %85 = arith.mulf %76, %64 : vector<1x32xf32>
    %86 = arith.mulf %75, %78 : vector<1x32xf32>
    %87 = arith.addf %85, %86 : vector<1x32xf32>
    %88 = math.tanh %87 : vector<1x32xf32>
    %89 = arith.mulf %84, %88 : vector<1x32xf32>
    %c8_i32_26 = arith.constant 8 : i32
    %90 = arith.muli %arg0, %c8_i32_26 : i32
    %c2_i32 = arith.constant 2 : i32
    %91 = arith.addi %90, %c2_i32 : i32
    %c1_i32_27 = arith.constant 1 : i32
    %92 = arith.cmpi slt, %91, %c1_i32_27 : i32
    %93 = arith.select %92, %89, %63 : vector<1x32xf32>
    %94 = arith.select %92, %87, %64 : vector<1x32xf32>
    %c2_28 = arith.constant 2 : index
    %c0_29 = arith.constant 0 : index
    %95 = vector.load %arg4[%c2_28, %c0_29] : memref<8x32xf32, #tpu.memory_space<vmem>>, vector<1x32xf32>
    tpu.vector_store %arg4[%c2_28, %c0_29], %93 {strides = array<i32>} : memref<8x32xf32, #tpu.memory_space<vmem>>, vector<1x32xf32>,
    %c3 = arith.constant 3 : index
    %c0_30 = arith.constant 0 : index
    %96 = vector.load %arg1[%c3, %c0_30] : memref<8x128xf32, #tpu.memory_space<vmem>>, vector<1x128xf32>
    %cst_31 = arith.constant dense<0.000000e+00> : vector<1x128xf32>
    %97 = tpu.matmul %93, %5, %cst_31 {dimension_numbers = #tpu.dot_dimension_numbers<[1], [0], [0], [1], [0, 0, 1, 1], [], []>} : vector<1x32xf32>, vector<32x128xf32>, vector<1x128xf32> -> vector<1x128xf32>
    %98 = arith.addf %96, %97 : vector<1x128xf32>
    %99 = vector.extract_strided_slice %98 {offsets = [0, 0], sizes = [1, 64], strides = [1, 1]} : vector<1x128xf32> to vector<1x64xf32>
    %100 = arith.negf %99 : vector<1x64xf32>
    %101 = math.exp %100 : vector<1x64xf32>
    %cst_32 = arith.constant 1.000000e+00 : f32
    %102 = vector.broadcast %cst_32 : f32 to vector<1x64xf32>
    %103 = arith.addf %102, %101 : vector<1x64xf32>
    %104 = arith.divf %102, %103 : vector<1x64xf32>
    %105 = vector.extract_strided_slice %104 {offsets = [0, 0], sizes = [1, 32], strides = [1, 1]} : vector<1x64xf32> to vector<1x32xf32>
    %106 = vector.extract_strided_slice %104 {offsets = [0, 32], sizes = [1, 32], strides = [1, 1]} : vector<1x64xf32> to vector<1x32xf32>
    %107 = vector.extract_strided_slice %98 {offsets = [0, 64], sizes = [1, 32], strides = [1, 1]} : vector<1x128xf32> to vector<1x32xf32>
    %108 = math.tanh %107 : vector<1x32xf32>
    %109 = vector.extract_strided_slice %98 {offsets = [0, 96], sizes = [1, 32], strides = [1, 1]} : vector<1x128xf32> to vector<1x32xf32>
    %110 = arith.negf %109 : vector<1x32xf32>
    %111 = math.exp %110 : vector<1x32xf32>
    %cst_33 = arith.constant 1.000000e+00 : f32
    %112 = vector.broadcast %cst_33 : f32 to vector<1x32xf32>
    %113 = arith.addf %112, %111 : vector<1x32xf32>
    %114 = arith.divf %112, %113 : vector<1x32xf32>
    %115 = arith.mulf %106, %94 : vector<1x32xf32>
    %116 = arith.mulf %105, %108 : vector<1x32xf32>
    %117 = arith.addf %115, %116 : vector<1x32xf32>
    %118 = math.tanh %117 : vector<1x32xf32>
    %119 = arith.mulf %114, %118 : vector<1x32xf32>
    %c8_i32_34 = arith.constant 8 : i32
    %120 = arith.muli %arg0, %c8_i32_34 : i32
    %c3_i32 = arith.constant 3 : i32
    %121 = arith.addi %120, %c3_i32 : i32
    %c1_i32_35 = arith.constant 1 : i32
    %122 = arith.cmpi slt, %121, %c1_i32_35 : i32
    %123 = arith.select %122, %119, %93 : vector<1x32xf32>
    %124 = arith.select %122, %117, %94 : vector<1x32xf32>
    %c3_36 = arith.constant 3 : index
    %c0_37 = arith.constant 0 : index
    %125 = vector.load %arg4[%c3_36, %c0_37] : memref<8x32xf32, #tpu.memory_space<vmem>>, vector<1x32xf32>
    tpu.vector_store %arg4[%c3_36, %c0_37], %123 {strides = array<i32>} : memref<8x32xf32, #tpu.memory_space<vmem>>, vector<1x32xf32>,
    %c4 = arith.constant 4 : index
    %c0_38 = arith.constant 0 : index
    %126 = vector.load %arg1[%c4, %c0_38] : memref<8x128xf32, #tpu.memory_space<vmem>>, vector<1x128xf32>
    %cst_39 = arith.constant dense<0.000000e+00> : vector<1x128xf32>
    %127 = tpu.matmul %123, %5, %cst_39 {dimension_numbers = #tpu.dot_dimension_numbers<[1], [0], [0], [1], [0, 0, 1, 1], [], []>} : vector<1x32xf32>, vector<32x128xf32>, vector<1x128xf32> -> vector<1x128xf32>
    %128 = arith.addf %126, %127 : vector<1x128xf32>
    %129 = vector.extract_strided_slice %128 {offsets = [0, 0], sizes = [1, 64], strides = [1, 1]} : vector<1x128xf32> to vector<1x64xf32>
    %130 = arith.negf %129 : vector<1x64xf32>
    %131 = math.exp %130 : vector<1x64xf32>
    %cst_40 = arith.constant 1.000000e+00 : f32
    %132 = vector.broadcast %cst_40 : f32 to vector<1x64xf32>
    %133 = arith.addf %132, %131 : vector<1x64xf32>
    %134 = arith.divf %132, %133 : vector<1x64xf32>
    %135 = vector.extract_strided_slice %134 {offsets = [0, 0], sizes = [1, 32], strides = [1, 1]} : vector<1x64xf32> to vector<1x32xf32>
    %136 = vector.extract_strided_slice %134 {offsets = [0, 32], sizes = [1, 32], strides = [1, 1]} : vector<1x64xf32> to vector<1x32xf32>
    %137 = vector.extract_strided_slice %128 {offsets = [0, 64], sizes = [1, 32], strides = [1, 1]} : vector<1x128xf32> to vector<1x32xf32>
    %138 = math.tanh %137 : vector<1x32xf32>
    %139 = vector.extract_strided_slice %128 {offsets = [0, 96], sizes = [1, 32], strides = [1, 1]} : vector<1x128xf32> to vector<1x32xf32>
    %140 = arith.negf %139 : vector<1x32xf32>
    %141 = math.exp %140 : vector<1x32xf32>
    %cst_41 = arith.constant 1.000000e+00 : f32
    %142 = vector.broadcast %cst_41 : f32 to vector<1x32xf32>
    %143 = arith.addf %142, %141 : vector<1x32xf32>
    %144 = arith.divf %142, %143 : vector<1x32xf32>
    %145 = arith.mulf %136, %124 : vector<1x32xf32>
    %146 = arith.mulf %135, %138 : vector<1x32xf32>
    %147 = arith.addf %145, %146 : vector<1x32xf32>
    %148 = math.tanh %147 : vector<1x32xf32>
    %149 = arith.mulf %144, %148 : vector<1x32xf32>
    %c8_i32_42 = arith.constant 8 : i32
    %150 = arith.muli %arg0, %c8_i32_42 : i32
    %c4_i32 = arith.constant 4 : i32
    %151 = arith.addi %150, %c4_i32 : i32
    %c1_i32_43 = arith.constant 1 : i32
    %152 = arith.cmpi slt, %151, %c1_i32_43 : i32
    %153 = arith.select %152, %149, %123 : vector<1x32xf32>
    %154 = arith.select %152, %147, %124 : vector<1x32xf32>
    %c4_44 = arith.constant 4 : index
    %c0_45 = arith.constant 0 : index
    %155 = vector.load %arg4[%c4_44, %c0_45] : memref<8x32xf32, #tpu.memory_space<vmem>>, vector<1x32xf32>
    tpu.vector_store %arg4[%c4_44, %c0_45], %153 {strides = array<i32>} : memref<8x32xf32, #tpu.memory_space<vmem>>, vector<1x32xf32>,
    %c5 = arith.constant 5 : index
    %c0_46 = arith.constant 0 : index
    %156 = vector.load %arg1[%c5, %c0_46] : memref<8x128xf32, #tpu.memory_space<vmem>>, vector<1x128xf32>
    %cst_47 = arith.constant dense<0.000000e+00> : vector<1x128xf32>
    %157 = tpu.matmul %153, %5, %cst_47 {dimension_numbers = #tpu.dot_dimension_numbers<[1], [0], [0], [1], [0, 0, 1, 1], [], []>} : vector<1x32xf32>, vector<32x128xf32>, vector<1x128xf32> -> vector<1x128xf32>
    %158 = arith.addf %156, %157 : vector<1x128xf32>
    %159 = vector.extract_strided_slice %158 {offsets = [0, 0], sizes = [1, 64], strides = [1, 1]} : vector<1x128xf32> to vector<1x64xf32>
    %160 = arith.negf %159 : vector<1x64xf32>
    %161 = math.exp %160 : vector<1x64xf32>
    %cst_48 = arith.constant 1.000000e+00 : f32
    %162 = vector.broadcast %cst_48 : f32 to vector<1x64xf32>
    %163 = arith.addf %162, %161 : vector<1x64xf32>
    %164 = arith.divf %162, %163 : vector<1x64xf32>
    %165 = vector.extract_strided_slice %164 {offsets = [0, 0], sizes = [1, 32], strides = [1, 1]} : vector<1x64xf32> to vector<1x32xf32>
    %166 = vector.extract_strided_slice %164 {offsets = [0, 32], sizes = [1, 32], strides = [1, 1]} : vector<1x64xf32> to vector<1x32xf32>
    %167 = vector.extract_strided_slice %158 {offsets = [0, 64], sizes = [1, 32], strides = [1, 1]} : vector<1x128xf32> to vector<1x32xf32>
    %168 = math.tanh %167 : vector<1x32xf32>
    %169 = vector.extract_strided_slice %158 {offsets = [0, 96], sizes = [1, 32], strides = [1, 1]} : vector<1x128xf32> to vector<1x32xf32>
    %170 = arith.negf %169 : vector<1x32xf32>
    %171 = math.exp %170 : vector<1x32xf32>
    %cst_49 = arith.constant 1.000000e+00 : f32
    %172 = vector.broadcast %cst_49 : f32 to vector<1x32xf32>
    %173 = arith.addf %172, %171 : vector<1x32xf32>
    %174 = arith.divf %172, %173 : vector<1x32xf32>
    %175 = arith.mulf %166, %154 : vector<1x32xf32>
    %176 = arith.mulf %165, %168 : vector<1x32xf32>
    %177 = arith.addf %175, %176 : vector<1x32xf32>
    %178 = math.tanh %177 : vector<1x32xf32>
    %179 = arith.mulf %174, %178 : vector<1x32xf32>
    %c8_i32_50 = arith.constant 8 : i32
    %180 = arith.muli %arg0, %c8_i32_50 : i32
    %c5_i32 = arith.constant 5 : i32
    %181 = arith.addi %180, %c5_i32 : i32
    %c1_i32_51 = arith.constant 1 : i32
    %182 = arith.cmpi slt, %181, %c1_i32_51 : i32
    %183 = arith.select %182, %179, %153 : vector<1x32xf32>
    %184 = arith.select %182, %177, %154 : vector<1x32xf32>
    %c5_52 = arith.constant 5 : index
    %c0_53 = arith.constant 0 : index
    %185 = vector.load %arg4[%c5_52, %c0_53] : memref<8x32xf32, #tpu.memory_space<vmem>>, vector<1x32xf32>
    tpu.vector_store %arg4[%c5_52, %c0_53], %183 {strides = array<i32>} : memref<8x32xf32, #tpu.memory_space<vmem>>, vector<1x32xf32>,
    %c6 = arith.constant 6 : index
    %c0_54 = arith.constant 0 : index
    %186 = vector.load %arg1[%c6, %c0_54] : memref<8x128xf32, #tpu.memory_space<vmem>>, vector<1x128xf32>
    %cst_55 = arith.constant dense<0.000000e+00> : vector<1x128xf32>
    %187 = tpu.matmul %183, %5, %cst_55 {dimension_numbers = #tpu.dot_dimension_numbers<[1], [0], [0], [1], [0, 0, 1, 1], [], []>} : vector<1x32xf32>, vector<32x128xf32>, vector<1x128xf32> -> vector<1x128xf32>
    %188 = arith.addf %186, %187 : vector<1x128xf32>
    %189 = vector.extract_strided_slice %188 {offsets = [0, 0], sizes = [1, 64], strides = [1, 1]} : vector<1x128xf32> to vector<1x64xf32>
    %190 = arith.negf %189 : vector<1x64xf32>
    %191 = math.exp %190 : vector<1x64xf32>
    %cst_56 = arith.constant 1.000000e+00 : f32
    %192 = vector.broadcast %cst_56 : f32 to vector<1x64xf32>
    %193 = arith.addf %192, %191 : vector<1x64xf32>
    %194 = arith.divf %192, %193 : vector<1x64xf32>
    %195 = vector.extract_strided_slice %194 {offsets = [0, 0], sizes = [1, 32], strides = [1, 1]} : vector<1x64xf32> to vector<1x32xf32>
    %196 = vector.extract_strided_slice %194 {offsets = [0, 32], sizes = [1, 32], strides = [1, 1]} : vector<1x64xf32> to vector<1x32xf32>
    %197 = vector.extract_strided_slice %188 {offsets = [0, 64], sizes = [1, 32], strides = [1, 1]} : vector<1x128xf32> to vector<1x32xf32>
    %198 = math.tanh %197 : vector<1x32xf32>
    %199 = vector.extract_strided_slice %188 {offsets = [0, 96], sizes = [1, 32], strides = [1, 1]} : vector<1x128xf32> to vector<1x32xf32>
    %200 = arith.negf %199 : vector<1x32xf32>
    %201 = math.exp %200 : vector<1x32xf32>
    %cst_57 = arith.constant 1.000000e+00 : f32
    %202 = vector.broadcast %cst_57 : f32 to vector<1x32xf32>
    %203 = arith.addf %202, %201 : vector<1x32xf32>
    %204 = arith.divf %202, %203 : vector<1x32xf32>
    %205 = arith.mulf %196, %184 : vector<1x32xf32>
    %206 = arith.mulf %195, %198 : vector<1x32xf32>
    %207 = arith.addf %205, %206 : vector<1x32xf32>
    %208 = math.tanh %207 : vector<1x32xf32>
    %209 = arith.mulf %204, %208 : vector<1x32xf32>
    %c8_i32_58 = arith.constant 8 : i32
    %210 = arith.muli %arg0, %c8_i32_58 : i32
    %c6_i32 = arith.constant 6 : i32
    %211 = arith.addi %210, %c6_i32 : i32
    %c1_i32_59 = arith.constant 1 : i32
    %212 = arith.cmpi slt, %211, %c1_i32_59 : i32
    %213 = arith.select %212, %209, %183 : vector<1x32xf32>
    %214 = arith.select %212, %207, %184 : vector<1x32xf32>
    %c6_60 = arith.constant 6 : index
    %c0_61 = arith.constant 0 : index
    %215 = vector.load %arg4[%c6_60, %c0_61] : memref<8x32xf32, #tpu.memory_space<vmem>>, vector<1x32xf32>
    tpu.vector_store %arg4[%c6_60, %c0_61], %213 {strides = array<i32>} : memref<8x32xf32, #tpu.memory_space<vmem>>, vector<1x32xf32>,
    %c7 = arith.constant 7 : index
    %c0_62 = arith.constant 0 : index
    %216 = vector.load %arg1[%c7, %c0_62] : memref<8x128xf32, #tpu.memory_space<vmem>>, vector<1x128xf32>
    %cst_63 = arith.constant dense<0.000000e+00> : vector<1x128xf32>
    %217 = tpu.matmul %213, %5, %cst_63 {dimension_numbers = #tpu.dot_dimension_numbers<[1], [0], [0], [1], [0, 0, 1, 1], [], []>} : vector<1x32xf32>, vector<32x128xf32>, vector<1x128xf32> -> vector<1x128xf32>
    %218 = arith.addf %216, %217 : vector<1x128xf32>
    %219 = vector.extract_strided_slice %218 {offsets = [0, 0], sizes = [1, 64], strides = [1, 1]} : vector<1x128xf32> to vector<1x64xf32>
    %220 = arith.negf %219 : vector<1x64xf32>
    %221 = math.exp %220 : vector<1x64xf32>
    %cst_64 = arith.constant 1.000000e+00 : f32
    %222 = vector.broadcast %cst_64 : f32 to vector<1x64xf32>
    %223 = arith.addf %222, %221 : vector<1x64xf32>
    %224 = arith.divf %222, %223 : vector<1x64xf32>
    %225 = vector.extract_strided_slice %224 {offsets = [0, 0], sizes = [1, 32], strides = [1, 1]} : vector<1x64xf32> to vector<1x32xf32>
    %226 = vector.extract_strided_slice %224 {offsets = [0, 32], sizes = [1, 32], strides = [1, 1]} : vector<1x64xf32> to vector<1x32xf32>
    %227 = vector.extract_strided_slice %218 {offsets = [0, 64], sizes = [1, 32], strides = [1, 1]} : vector<1x128xf32> to vector<1x32xf32>
    %228 = math.tanh %227 : vector<1x32xf32>
    %229 = vector.extract_strided_slice %218 {offsets = [0, 96], sizes = [1, 32], strides = [1, 1]} : vector<1x128xf32> to vector<1x32xf32>
    %230 = arith.negf %229 : vector<1x32xf32>
    %231 = math.exp %230 : vector<1x32xf32>
    %cst_65 = arith.constant 1.000000e+00 : f32
    %232 = vector.broadcast %cst_65 : f32 to vector<1x32xf32>
    %233 = arith.addf %232, %231 : vector<1x32xf32>
    %234 = arith.divf %232, %233 : vector<1x32xf32>
    %235 = arith.mulf %226, %214 : vector<1x32xf32>
    %236 = arith.mulf %225, %228 : vector<1x32xf32>
    %237 = arith.addf %235, %236 : vector<1x32xf32>
    %238 = math.tanh %237 : vector<1x32xf32>
    %239 = arith.mulf %234, %238 : vector<1x32xf32>
    %c8_i32_66 = arith.constant 8 : i32
    %240 = arith.muli %arg0, %c8_i32_66 : i32
    %c7_i32 = arith.constant 7 : i32
    %241 = arith.addi %240, %c7_i32 : i32
    %c1_i32_67 = arith.constant 1 : i32
    %242 = arith.cmpi slt, %241, %c1_i32_67 : i32
    %243 = arith.select %242, %239, %213 : vector<1x32xf32>
    %244 = arith.select %242, %237, %214 : vector<1x32xf32>
    %c7_68 = arith.constant 7 : index
    %c0_69 = arith.constant 0 : index
    %245 = vector.load %arg4[%c7_68, %c0_69] : memref<8x32xf32, #tpu.memory_space<vmem>>, vector<1x32xf32>
    tpu.vector_store %arg4[%c7_68, %c0_69], %243 {strides = array<i32>} : memref<8x32xf32, #tpu.memory_space<vmem>>, vector<1x32xf32>,
    %c0_70 = arith.constant 0 : index
    %c0_71 = arith.constant 0 : index
    %246 = vector.load %arg6[%c0_70, %c0_71] : memref<2x32xf32, #tpu.memory_space<vmem>>, vector<1x32xf32>
    tpu.vector_store %arg6[%c0_70, %c0_71], %243 {strides = array<i32>} : memref<2x32xf32, #tpu.memory_space<vmem>>, vector<1x32xf32>,
    %c1_72 = arith.constant 1 : index
    %c0_73 = arith.constant 0 : index
    %247 = vector.load %arg6[%c1_72, %c0_73] : memref<2x32xf32, #tpu.memory_space<vmem>>, vector<1x32xf32>
    tpu.vector_store %arg6[%c1_72, %c0_73], %244 {strides = array<i32>} : memref<2x32xf32, #tpu.memory_space<vmem>>, vector<1x32xf32>,
    %c0_74 = arith.constant 0 : index
    %c0_75 = arith.constant 0 : index
    %248 = vector.load %arg6[%c0_74, %c0_75] : memref<2x32xf32, #tpu.memory_space<vmem>>, vector<2x32xf32>
    %c0_76 = arith.constant 0 : index
    %c0_77 = arith.constant 0 : index
    %249 = vector.load %arg5[%c0_76, %c0_77] : memref<2x32xf32, #tpu.memory_space<vmem>>, vector<2x32xf32>
    tpu.vector_store %arg5[%c0_76, %c0_77], %248 {strides = array<i32>} : memref<2x32xf32, #tpu.memory_space<vmem>>, vector<2x32xf32>,
    return
  }
  func.func @transform_0(%arg0: i32) -> (i32, i32) {
    %c0_i32 = arith.constant 0 : i32
    %c0_i32_0 = arith.constant 0 : i32
    return %arg0, %c0_i32 : i32, i32
  }
  func.func @transform_1(%arg0: i32) -> (i32, i32) {
    %c0_i32 = arith.constant 0 : i32
    %c0_i32_0 = arith.constant 0 : i32
    %c0_i32_1 = arith.constant 0 : i32
    return %c0_i32, %c0_i32_0 : i32, i32
  }
  func.func @transform_2(%arg0: i32) -> (i32, i32) {
    %c0_i32 = arith.constant 0 : i32
    %c0_i32_0 = arith.constant 0 : i32
    %c0_i32_1 = arith.constant 0 : i32
    return %c0_i32, %c0_i32_0 : i32, i32
  }
  func.func @transform_3(%arg0: i32) -> (i32, i32) {
    %c0_i32 = arith.constant 0 : i32
    %c0_i32_0 = arith.constant 0 : i32
    return %arg0, %c0_i32 : i32, i32
  }
  func.func @transform_4(%arg0: i32) -> (i32, i32) {
    %c0_i32 = arith.constant 0 : i32
    %c0_i32_0 = arith.constant 0 : i32
    %c0_i32_1 = arith.constant 0 : i32
    return %c0_i32, %c0_i32_0 : i32, i32
  }
}

</mosaic_0001>

<llo_original>
// kernel: encoder_rnn_sequence.1
$region0: #{encoder_rnn_sequence.1}
  #allocation0 [shape = 'u32[]', space=smem, size = 0x4, offset = 0x4, fixed_abs, tag = 'smem constant byte address 0x4 - core index']
  #allocation1 [shape = 'u32[144,128]{1,0:T(1,128)}', space=vmem, size = 0x12000, scoped, tag = 'internal scratch']
  #allocation2 [shape = 'f32[2,32]{1,0:T(2,128)}', space=vmem, size = 0x400, scoped, tag = 'scratch operand']
  %s0 = inlined_call_operand.vmem [shape: f32[8,128], index: 0, kind: input, shape index: {}]
  %s1 = inlined_call_operand.vmem [shape: f32[32,128], index: 1, kind: input, shape index: {}]
  %s2 = inlined_call_operand.vmem [shape: f32[2,32], index: 2, kind: input, shape index: {}]
  %s3 = inlined_call_operand.vmem [shape: f32[8,32], index: 3, kind: output, shape index: {0}]
  %s4 = inlined_call_operand.vmem [shape: f32[2,32], index: 4, kind: output, shape index: {1}]
  %5 = xla_tuple %s3, %s4
  %s6 = sld [smem:[#allocation0]]
  $region34: #{encoder_rnn_sequence.1} parent=0
    _
  %s8 = ssub.s32 1, %s6
  %s9 = scalar_select 0, %s8, %s6
  // Predicated region
  $region2: #{encoder_rnn_sequence.1} parent=0 // pred_check
    _
  $region3: #{encoder_rnn_sequence.1} parent=0 // pred_check_branch
    %11 = sbr.rel (0) target = $region5
  $region4: #{encoder_rnn_sequence.1} parent=0 // pred_region
    _
  $region5: #{encoder_rnn_sequence.1} parent=0 // pred_fallthru
    _
  // Predicated region
  $region6: #{encoder_rnn_sequence.1} parent=0 // pred_check
    _
  $region7: #{encoder_rnn_sequence.1} parent=0 // pred_check_branch
    %13 = sbr.rel (0) target = $region9
  $region8: #{encoder_rnn_sequence.1} parent=0 // pred_region
    _
  $region9: #{encoder_rnn_sequence.1} parent=0 // pred_fallthru
    _
  // Predicated region
  $region10: #{encoder_rnn_sequence.1} parent=0 // pred_check
    _
  $region11: #{encoder_rnn_sequence.1} parent=0 // pred_check_branch
    %15 = sbr.rel (0) target = $region13
  $region12: #{encoder_rnn_sequence.1} parent=0 // pred_region
    _
  $region13: #{encoder_rnn_sequence.1} parent=0 // pred_fallthru
    _
  %p16 = scmp.eq.s32.totalorder 0, 0
  // Predicated region
  $region14: #{encoder_rnn_sequence.1} parent=0 // pred_check
    %p17 = pneg %p16
  $region15: #{encoder_rnn_sequence.1} parent=0 // pred_check_branch
    %19 = sbr.rel (%p17) target = $region17
  $region16: #{encoder_rnn_sequence.1} parent=0 // pred_region
    %v20 = vld [vmem:[%s2] sm:$0x3]
    %vm21 = vcmask 254976
    %22 = vst.msk [vmem:[#allocation2] sm:$0x3] %vm21, %v20
  $region17: #{encoder_rnn_sequence.1} parent=0 // pred_fallthru
    _
  %v23 = vld [vmem:[#allocation2] sm:$0x1]
  %v24 = vld [vmem:[#allocation2 + $0x1] sm:$0x1]
  %v25 = vld [vmem:[%s1] sm:$0xff]
  %v26 = vld [vmem:[%s1 + $0x8] sm:$0xff]
  %v27 = vld [vmem:[%s1 + $0x10] sm:$0xff]
  %v28 = vld [vmem:[%s1 + $0x18] sm:$0xff]
  %v29 = vld [vmem:[%s0] sm:$0x1]
  %vm30 = vcmask 261120
  %v32 = vsel %vm30, %v23, 0
  %34 = vmatprep.subr.mxu0 0.0
  %35 = vmatpush1.msra.mxu0 %v25
  %36 = vmatprep.subr.mxu0 0.0
  %37 = vmatpush1.msra.mxu0 %v26
  %38 = vmatprep.subr.mxu0 0.0
  %39 = vmatpush1.msra.mxu0 %v27
  %40 = vmatprep.subr.mxu0 0.0
  %41 = vmatpush1.msra.mxu0 %v28
  %42 = vmatprep.subr.mxu0 0.0
  %43 = vmatpush1.msra.mxu0 0.0
  %44 = vmatprep.subr.mxu0 0.0
  %45 = vmatpush1.msra.mxu0 0.0
  %46 = vmatprep.subr.mxu0 0.0
  %47 = vmatpush1.msra.mxu0 0.0
  %48 = vmatprep.subr.mxu0 0.0
  %49 = vmatpush1.msra.mxu0 0.0
  %50 = vmatprep.subr.mxu0 0.0
  %51 = vmatpush1.msra.mxu0 0.0
  %52 = vmatprep.subr.mxu0 0.0
  %53 = vmatpush1.msra.mxu0 0.0
  %54 = vmatprep.subr.mxu0 0.0
  %55 = vmatpush1.msra.mxu0 0.0
  %56 = vmatprep.subr.mxu0 0.0
  %57 = vmatpush1.msra.mxu0 0.0
  %58 = vmatprep.subr.mxu0 0.0
  %59 = vmatpush1.msra.mxu0 0.0
  %60 = vmatprep.subr.mxu0 0.0
  %61 = vmatpush1.msra.mxu0 0.0
  %62 = vmatprep.subr.mxu0 0.0
  %63 = vmatpush1.msra.mxu0 0.0
  %64 = vmatprep.subr.mxu0 0.0
  %65 = vmatpush1.msra.mxu0 0.0
  %66 = vmatprep.subr.mxu0 0.0
  %67 = vmatpush1.msra.mxu0 0.0
  %68 = vmatprep.subr.mxu0 0.0
  %69 = vmatpush1.msra.mxu0 0.0
  %70 = vmatprep.subr.mxu0 0.0
  %71 = vmatpush1.msra.mxu0 0.0
  %72 = vmatprep.subr.mxu0 0.0
  %73 = vmatpush1.msra.mxu0 0.0
  %74 = vmatprep.subr.mxu0 0.0
  %75 = vmatpush1.msra.mxu0 0.0
  %76 = vmatprep.subr.mxu0 0.0
  %77 = vmatpush1.msra.mxu0 0.0
  %78 = vmatprep.subr.mxu0 0.0
  %79 = vmatpush1.msra.mxu0 0.0
  %80 = vmatprep.subr.mxu0 0.0
  %81 = vmatpush1.msra.mxu0 0.0
  %82 = vmatprep.subr.mxu0 0.0
  %83 = vmatpush1.msra.mxu0 0.0
  %84 = vmatprep.subr.mxu0 0.0
  %85 = vmatpush1.msra.mxu0 0.0
  %86 = vmatprep.subr.mxu0 0.0
  %87 = vmatpush1.msra.mxu0 0.0
  %88 = vmatprep.subr.mxu0 0.0
  %89 = vmatpush1.msra.mxu0 0.0
  %90 = vmatprep.subr.mxu0 0.0
  %91 = vmatpush1.msra.mxu0 0.0
  %92 = vmatprep.subr.mxu0 0.0
  %93 = vmatpush1.msra.mxu0 0.0
  %94 = vmatprep.subr.mxu0 0.0
  %95 = vmatpush1.msra.mxu0 0.0
  %96 = vmatprep.subr.mxu0 0.0
  %97 = vmatpush1.msra.mxu0 0.0
  %98 = vmatprep.mubr.f32.mxu0 0.0
  %99 = vmatmul.mubr.f32.gmra.mrb[0].mxu0 %v32
  %v100 = vpop.f32.mrb[0].mxu0
  %v101 = vadd.f32 0.0, %v100
  %v102 = vpop.f32.mrb[0].mxu0
  %103 = vdwg.mxu0
  %v104 = vadd.f32 %v29, %v101
  %v105 = vxor.u32 %v104, 2147483648
  %v106 = vmul.f32 %v105, 1.442695
  %v107 = vpow.pop %v106
  %v108 = vadd.f32 %v107, 1.0
  %v109 = vrcp.pop %v108
  %v110 = vmul.f32 1.0, %v109
  %v111 = vtanh.pop %v104
  %113 = vrot.lane.b32.xlu0 %v24, 32
  %v114 = vpop.permute.xlu0 %113
  %v116 = vmul.f32 %v110, %v114
  %118 = vrot.lane.b32.xlu0 %v111, 64
  %v119 = vpop.permute.xlu0 %118
  %v121 = vmul.f32 %v110, %v119
  %123 = vrot.lane.b32.xlu0 %v121, 32
  %v124 = vpop.permute.xlu0 %123
  %v126 = vadd.f32 %v116, %v124
  %v127 = vtanh.pop %v126
  %129 = vrot.lane.b32.xlu0 %v127, 64
  %v130 = vpop.permute.xlu0 %129
  %v132 = vmul.f32 %v110, %v130
  %s133 = smul.u32 0, 8
  %p134 = scmp.lt.s32.totalorder %s133, 1
  %s135 = scalar_select %p134, 1, 0
  %v136 = vstv %s135
  %vm137 = vcmp.eq.s32.totalorder %v136, 1
  %138 = vrot.lane.b32.xlu0 %v23, 96
  %v139 = vpop.permute.xlu0 %138
  %v141 = vsel %vm137, %v132, %v139
  %v142 = vsel %vm137, %v126, %v114
  %144 = vrot.lane.b32.xlu0 %v141, 32
  %v145 = vpop.permute.xlu0 %144
  %vm147 = vcmask 253952
  %148 = vst.msk [vmem:[%s3] sm:$0x1] %vm147, %v145
  %v149 = vld [vmem:[%s0 + $0x1] sm:$0x1]
  %v150 = vsel %vm30, %v145, 0
  %152 = vmatprep.subr.mxu0 0.0
  %153 = vmatpush1.msra.mxu0 %v25
  %154 = vmatprep.subr.mxu0 0.0
  %155 = vmatpush1.msra.mxu0 %v26
  %156 = vmatprep.subr.mxu0 0.0
  %157 = vmatpush1.msra.mxu0 %v27
  %158 = vmatprep.subr.mxu0 0.0
  %159 = vmatpush1.msra.mxu0 %v28
  %160 = vmatprep.subr.mxu0 0.0
  %161 = vmatpush1.msra.mxu0 0.0
  %162 = vmatprep.subr.mxu0 0.0
  %163 = vmatpush1.msra.mxu0 0.0
  %164 = vmatprep.subr.mxu0 0.0
  %165 = vmatpush1.msra.mxu0 0.0
  %166 = vmatprep.subr.mxu0 0.0
  %167 = vmatpush1.msra.mxu0 0.0
  %168 = vmatprep.subr.mxu0 0.0
  %169 = vmatpush1.msra.mxu0 0.0
  %170 = vmatprep.subr.mxu0 0.0
  %171 = vmatpush1.msra.mxu0 0.0
  %172 = vmatprep.subr.mxu0 0.0
  %173 = vmatpush1.msra.mxu0 0.0
  %174 = vmatprep.subr.mxu0 0.0
  %175 = vmatpush1.msra.mxu0 0.0
  %176 = vmatprep.subr.mxu0 0.0
  %177 = vmatpush1.msra.mxu0 0.0
  %178 = vmatprep.subr.mxu0 0.0
  %179 = vmatpush1.msra.mxu0 0.0
  %180 = vmatprep.subr.mxu0 0.0
  %181 = vmatpush1.msra.mxu0 0.0
  %182 = vmatprep.subr.mxu0 0.0
  %183 = vmatpush1.msra.mxu0 0.0
  %184 = vmatprep.subr.mxu0 0.0
  %185 = vmatpush1.msra.mxu0 0.0
  %186 = vmatprep.subr.mxu0 0.0
  %187 = vmatpush1.msra.mxu0 0.0
  %188 = vmatprep.subr.mxu0 0.0
  %189 = vmatpush1.msra.mxu0 0.0
  %190 = vmatprep.subr.mxu0 0.0
  %191 = vmatpush1.msra.mxu0 0.0
  %192 = vmatprep.subr.mxu0 0.0
  %193 = vmatpush1.msra.mxu0 0.0
  %194 = vmatprep.subr.mxu0 0.0
  %195 = vmatpush1.msra.mxu0 0.0
  %196 = vmatprep.subr.mxu0 0.0
  %197 = vmatpush1.msra.mxu0 0.0
  %198 = vmatprep.subr.mxu0 0.0
  %199 = vmatpush1.msra.mxu0 0.0
  %200 = vmatprep.subr.mxu0 0.0
  %201 = vmatpush1.msra.mxu0 0.0
  %202 = vmatprep.subr.mxu0 0.0
  %203 = vmatpush1.msra.mxu0 0.0
  %204 = vmatprep.subr.mxu0 0.0
  %205 = vmatpush1.msra.mxu0 0.0
  %206 = vmatprep.subr.mxu0 0.0
  %207 = vmatpush1.msra.mxu0 0.0
  %208 = vmatprep.subr.mxu0 0.0
  %209 = vmatpush1.msra.mxu0 0.0
  %210 = vmatprep.subr.mxu0 0.0
  %211 = vmatpush1.msra.mxu0 0.0
  %212 = vmatprep.subr.mxu0 0.0
  %213 = vmatpush1.msra.mxu0 0.0
  %214 = vmatprep.subr.mxu0 0.0
  %215 = vmatpush1.msra.mxu0 0.0
  %216 = vmatprep.mubr.f32.mxu0 0.0
  %217 = vmatmul.mubr.f32.gmra.mrb[0].mxu0 %v150
  %v218 = vpop.f32.mrb[0].mxu0
  %v219 = vadd.f32 0.0, %v218
  %v220 = vpop.f32.mrb[0].mxu0
  %221 = vdwg.mxu0
  %v222 = vadd.f32 %v149, %v219
  %v223 = vxor.u32 %v222, 2147483648
  %v224 = vmul.f32 %v223, 1.442695
  %v225 = vpow.pop %v224
  %v226 = vadd.f32 %v225, 1.0
  %v227 = vrcp.pop %v226
  %v228 = vmul.f32 1.0, %v227
  %v229 = vtanh.pop %v222
  %v230 = vmul.f32 %v228, %v142
  %232 = vrot.lane.b32.xlu0 %v229, 64
  %v233 = vpop.permute.xlu0 %232
  %v235 = vmul.f32 %v228, %v233
  %237 = vrot.lane.b32.xlu0 %v235, 32
  %v238 = vpop.permute.xlu0 %237
  %v240 = vadd.f32 %v230, %v238
  %v241 = vtanh.pop %v240
  %243 = vrot.lane.b32.xlu0 %v241, 64
  %v244 = vpop.permute.xlu0 %243
  %v246 = vmul.f32 %v228, %v244
  %s247 = sadd.s32 %s133, 1
  %p248 = scmp.lt.s32.totalorder %s247, 1
  %s249 = scalar_select %p248, 1, 0
  %v250 = vstv %s249
  %vm251 = vcmp.eq.s32.totalorder %v250, 1
  %v252 = vsel %vm251, %v246, %v141
  %v253 = vsel %vm251, %v240, %v142
  %255 = vrot.lane.b32.xlu0 %v252, 32
  %v256 = vpop.permute.xlu0 %255
  %258 = vst.msk [vmem:[%s3 + $0x1] sm:$0x1] %vm147, %v256
  %v259 = vld [vmem:[%s0 + $0x2] sm:$0x1]
  %v260 = vsel %vm30, %v256, 0
  %262 = vmatprep.subr.mxu0 0.0
  %263 = vmatpush1.msra.mxu0 %v25
  %264 = vmatprep.subr.mxu0 0.0
  %265 = vmatpush1.msra.mxu0 %v26
  %266 = vmatprep.subr.mxu0 0.0
  %267 = vmatpush1.msra.mxu0 %v27
  %268 = vmatprep.subr.mxu0 0.0
  %269 = vmatpush1.msra.mxu0 %v28
  %270 = vmatprep.subr.mxu0 0.0
  %271 = vmatpush1.msra.mxu0 0.0
  %272 = vmatprep.subr.mxu0 0.0
  %273 = vmatpush1.msra.mxu0 0.0
  %274 = vmatprep.subr.mxu0 0.0
  %275 = vmatpush1.msra.mxu0 0.0
  %276 = vmatprep.subr.mxu0 0.0
  %277 = vmatpush1.msra.mxu0 0.0
  %278 = vmatprep.subr.mxu0 0.0
  %279 = vmatpush1.msra.mxu0 0.0
  %280 = vmatprep.subr.mxu0 0.0
  %281 = vmatpush1.msra.mxu0 0.0
  %282 = vmatprep.subr.mxu0 0.0
  %283 = vmatpush1.msra.mxu0 0.0
  %284 = vmatprep.subr.mxu0 0.0
  %285 = vmatpush1.msra.mxu0 0.0
  %286 = vmatprep.subr.mxu0 0.0
  %287 = vmatpush1.msra.mxu0 0.0
  %288 = vmatprep.subr.mxu0 0.0
  %289 = vmatpush1.msra.mxu0 0.0
  %290 = vmatprep.subr.mxu0 0.0
  %291 = vmatpush1.msra.mxu0 0.0
  %292 = vmatprep.subr.mxu0 0.0
  %293 = vmatpush1.msra.mxu0 0.0
  %294 = vmatprep.subr.mxu0 0.0
  %295 = vmatpush1.msra.mxu0 0.0
  %296 = vmatprep.subr.mxu0 0.0
  %297 = vmatpush1.msra.mxu0 0.0
  %298 = vmatprep.subr.mxu0 0.0
  %299 = vmatpush1.msra.mxu0 0.0
  %300 = vmatprep.subr.mxu0 0.0
  %301 = vmatpush1.msra.mxu0 0.0
  %302 = vmatprep.subr.mxu0 0.0
  %303 = vmatpush1.msra.mxu0 0.0
  %304 = vmatprep.subr.mxu0 0.0
  %305 = vmatpush1.msra.mxu0 0.0
  %306 = vmatprep.subr.mxu0 0.0
  %307 = vmatpush1.msra.mxu0 0.0
  %308 = vmatprep.subr.mxu0 0.0
  %309 = vmatpush1.msra.mxu0 0.0
  %310 = vmatprep.subr.mxu0 0.0
  %311 = vmatpush1.msra.mxu0 0.0
  %312 = vmatprep.subr.mxu0 0.0
  %313 = vmatpush1.msra.mxu0 0.0
  %314 = vmatprep.subr.mxu0 0.0
  %315 = vmatpush1.msra.mxu0 0.0
  %316 = vmatprep.subr.mxu0 0.0
  %317 = vmatpush1.msra.mxu0 0.0
  %318 = vmatprep.subr.mxu0 0.0
  %319 = vmatpush1.msra.mxu0 0.0
  %320 = vmatprep.subr.mxu0 0.0
  %321 = vmatpush1.msra.mxu0 0.0
  %322 = vmatprep.subr.mxu0 0.0
  %323 = vmatpush1.msra.mxu0 0.0
  %324 = vmatprep.subr.mxu0 0.0
  %325 = vmatpush1.msra.mxu0 0.0
  %326 = vmatprep.mubr.f32.mxu0 0.0
  %327 = vmatmul.mubr.f32.gmra.mrb[0].mxu0 %v260
  %v328 = vpop.f32.mrb[0].mxu0
  %v329 = vadd.f32 0.0, %v328
  %v330 = vpop.f32.mrb[0].mxu0
  %331 = vdwg.mxu0
  %v332 = vadd.f32 %v259, %v329
  %v333 = vxor.u32 %v332, 2147483648
  %v334 = vmul.f32 %v333, 1.442695
  %v335 = vpow.pop %v334
  %v336 = vadd.f32 %v335, 1.0
  %v337 = vrcp.pop %v336
  %v338 = vmul.f32 1.0, %v337
  %v339 = vtanh.pop %v332
  %v340 = vmul.f32 %v338, %v253
  %342 = vrot.lane.b32.xlu0 %v339, 64
  %v343 = vpop.permute.xlu0 %342
  %v345 = vmul.f32 %v338, %v343
  %347 = vrot.lane.b32.xlu0 %v345, 32
  %v348 = vpop.permute.xlu0 %347
  %v350 = vadd.f32 %v340, %v348
  %v351 = vtanh.pop %v350
  %353 = vrot.lane.b32.xlu0 %v351, 64
  %v354 = vpop.permute.xlu0 %353
  %v356 = vmul.f32 %v338, %v354
  %s357 = sadd.s32 %s133, 2
  %p358 = scmp.lt.s32.totalorder %s357, 1
  %s359 = scalar_select %p358, 1, 0
  %v360 = vstv %s359
  %vm361 = vcmp.eq.s32.totalorder %v360, 1
  %v362 = vsel %vm361, %v356, %v252
  %v363 = vsel %vm361, %v350, %v253
  %365 = vrot.lane.b32.xlu0 %v362, 32
  %v366 = vpop.permute.xlu0 %365
  %368 = vst.msk [vmem:[%s3 + $0x2] sm:$0x1] %vm147, %v366
  %v369 = vld [vmem:[%s0 + $0x3] sm:$0x1]
  %v370 = vsel %vm30, %v366, 0
  %372 = vmatprep.subr.mxu0 0.0
  %373 = vmatpush1.msra.mxu0 %v25
  %374 = vmatprep.subr.mxu0 0.0
  %375 = vmatpush1.msra.mxu0 %v26
  %376 = vmatprep.subr.mxu0 0.0
  %377 = vmatpush1.msra.mxu0 %v27
  %378 = vmatprep.subr.mxu0 0.0
  %379 = vmatpush1.msra.mxu0 %v28
  %380 = vmatprep.subr.mxu0 0.0
  %381 = vmatpush1.msra.mxu0 0.0
  %382 = vmatprep.subr.mxu0 0.0
  %383 = vmatpush1.msra.mxu0 0.0
  %384 = vmatprep.subr.mxu0 0.0
  %385 = vmatpush1.msra.mxu0 0.0
  %386 = vmatprep.subr.mxu0 0.0
  %387 = vmatpush1.msra.mxu0 0.0
  %388 = vmatprep.subr.mxu0 0.0
  %389 = vmatpush1.msra.mxu0 0.0
  %390 = vmatprep.subr.mxu0 0.0
  %391 = vmatpush1.msra.mxu0 0.0
  %392 = vmatprep.subr.mxu0 0.0
  %393 = vmatpush1.msra.mxu0 0.0
  %394 = vmatprep.subr.mxu0 0.0
  %395 = vmatpush1.msra.mxu0 0.0
  %396 = vmatprep.subr.mxu0 0.0
  %397 = vmatpush1.msra.mxu0 0.0
  %398 = vmatprep.subr.mxu0 0.0
  %399 = vmatpush1.msra.mxu0 0.0
  %400 = vmatprep.subr.mxu0 0.0
  %401 = vmatpush1.msra.mxu0 0.0
  %402 = vmatprep.subr.mxu0 0.0
  %403 = vmatpush1.msra.mxu0 0.0
  %404 = vmatprep.subr.mxu0 0.0
  %405 = vmatpush1.msra.mxu0 0.0
  %406 = vmatprep.subr.mxu0 0.0
  %407 = vmatpush1.msra.mxu0 0.0
  %408 = vmatprep.subr.mxu0 0.0
  %409 = vmatpush1.msra.mxu0 0.0
  %410 = vmatprep.subr.mxu0 0.0
  %411 = vmatpush1.msra.mxu0 0.0
  %412 = vmatprep.subr.mxu0 0.0
  %413 = vmatpush1.msra.mxu0 0.0
  %414 = vmatprep.subr.mxu0 0.0
  %415 = vmatpush1.msra.mxu0 0.0
  %416 = vmatprep.subr.mxu0 0.0
  %417 = vmatpush1.msra.mxu0 0.0
  %418 = vmatprep.subr.mxu0 0.0
  %419 = vmatpush1.msra.mxu0 0.0
  %420 = vmatprep.subr.mxu0 0.0
  %421 = vmatpush1.msra.mxu0 0.0
  %422 = vmatprep.subr.mxu0 0.0
  %423 = vmatpush1.msra.mxu0 0.0
  %424 = vmatprep.subr.mxu0 0.0
  %425 = vmatpush1.msra.mxu0 0.0
  %426 = vmatprep.subr.mxu0 0.0
  %427 = vmatpush1.msra.mxu0 0.0
  %428 = vmatprep.subr.mxu0 0.0
  %429 = vmatpush1.msra.mxu0 0.0
  %430 = vmatprep.subr.mxu0 0.0
  %431 = vmatpush1.msra.mxu0 0.0
  %432 = vmatprep.subr.mxu0 0.0
  %433 = vmatpush1.msra.mxu0 0.0
  %434 = vmatprep.subr.mxu0 0.0
  %435 = vmatpush1.msra.mxu0 0.0
  %436 = vmatprep.mubr.f32.mxu0 0.0
  %437 = vmatmul.mubr.f32.gmra.mrb[0].mxu0 %v370
  %v438 = vpop.f32.mrb[0].mxu0
  %v439 = vadd.f32 0.0, %v438
  %v440 = vpop.f32.mrb[0].mxu0
  %441 = vdwg.mxu0
  %v442 = vadd.f32 %v369, %v439
  %v443 = vxor.u32 %v442, 2147483648
  %v444 = vmul.f32 %v443, 1.442695
  %v445 = vpow.pop %v444
  %v446 = vadd.f32 %v445, 1.0
  %v447 = vrcp.pop %v446
  %v448 = vmul.f32 1.0, %v447
  %v449 = vtanh.pop %v442
  %v450 = vmul.f32 %v448, %v363
  %452 = vrot.lane.b32.xlu0 %v449, 64
  %v453 = vpop.permute.xlu0 %452
  %v455 = vmul.f32 %v448, %v453
  %457 = vrot.lane.b32.xlu0 %v455, 32
  %v458 = vpop.permute.xlu0 %457
  %v460 = vadd.f32 %v450, %v458
  %v461 = vtanh.pop %v460
  %463 = vrot.lane.b32.xlu0 %v461, 64
  %v464 = vpop.permute.xlu0 %463
  %v466 = vmul.f32 %v448, %v464
  %s467 = sadd.s32 %s133, 3
  %p468 = scmp.lt.s32.totalorder %s467, 1
  %s469 = scalar_select %p468, 1, 0
  %v470 = vstv %s469
  %vm471 = vcmp.eq.s32.totalorder %v470, 1
  %v472 = vsel %vm471, %v466, %v362
  %v473 = vsel %vm471, %v460, %v363
  %475 = vrot.lane.b32.xlu0 %v472, 32
  %v476 = vpop.permute.xlu0 %475
  %478 = vst.msk [vmem:[%s3 + $0x3] sm:$0x1] %vm147, %v476
  %v479 = vld [vmem:[%s0 + $0x4] sm:$0x1]
  %v480 = vsel %vm30, %v476, 0
  %482 = vmatprep.subr.mxu0 0.0
  %483 = vmatpush1.msra.mxu0 %v25
  %484 = vmatprep.subr.mxu0 0.0
  %485 = vmatpush1.msra.mxu0 %v26
  %486 = vmatprep.subr.mxu0 0.0
  %487 = vmatpush1.msra.mxu0 %v27
  %488 = vmatprep.subr.mxu0 0.0
  %489 = vmatpush1.msra.mxu0 %v28
  %490 = vmatprep.subr.mxu0 0.0
  %491 = vmatpush1.msra.mxu0 0.0
  %492 = vmatprep.subr.mxu0 0.0
  %493 = vmatpush1.msra.mxu0 0.0
  %494 = vmatprep.subr.mxu0 0.0
  %495 = vmatpush1.msra.mxu0 0.0
  %496 = vmatprep.subr.mxu0 0.0
  %497 = vmatpush1.msra.mxu0 0.0
  %498 = vmatprep.subr.mxu0 0.0
  %499 = vmatpush1.msra.mxu0 0.0
  %500 = vmatprep.subr.mxu0 0.0
  %501 = vmatpush1.msra.mxu0 0.0
  %502 = vmatprep.subr.mxu0 0.0
  %503 = vmatpush1.msra.mxu0 0.0
  %504 = vmatprep.subr.mxu0 0.0
  %505 = vmatpush1.msra.mxu0 0.0
  %506 = vmatprep.subr.mxu0 0.0
  %507 = vmatpush1.msra.mxu0 0.0
  %508 = vmatprep.subr.mxu0 0.0
  %509 = vmatpush1.msra.mxu0 0.0
  %510 = vmatprep.subr.mxu0 0.0
  %511 = vmatpush1.msra.mxu0 0.0
  %512 = vmatprep.subr.mxu0 0.0
  %513 = vmatpush1.msra.mxu0 0.0
  %514 = vmatprep.subr.mxu0 0.0
  %515 = vmatpush1.msra.mxu0 0.0
  %516 = vmatprep.subr.mxu0 0.0
  %517 = vmatpush1.msra.mxu0 0.0
  %518 = vmatprep.subr.mxu0 0.0
  %519 = vmatpush1.msra.mxu0 0.0
  %520 = vmatprep.subr.mxu0 0.0
  %521 = vmatpush1.msra.mxu0 0.0
  %522 = vmatprep.subr.mxu0 0.0
  %523 = vmatpush1.msra.mxu0 0.0
  %524 = vmatprep.subr.mxu0 0.0
  %525 = vmatpush1.msra.mxu0 0.0
  %526 = vmatprep.subr.mxu0 0.0
  %527 = vmatpush1.msra.mxu0 0.0
  %528 = vmatprep.subr.mxu0 0.0
  %529 = vmatpush1.msra.mxu0 0.0
  %530 = vmatprep.subr.mxu0 0.0
  %531 = vmatpush1.msra.mxu0 0.0
  %532 = vmatprep.subr.mxu0 0.0
  %533 = vmatpush1.msra.mxu0 0.0
  %534 = vmatprep.subr.mxu0 0.0
  %535 = vmatpush1.msra.mxu0 0.0
  %536 = vmatprep.subr.mxu0 0.0
  %537 = vmatpush1.msra.mxu0 0.0
  %538 = vmatprep.subr.mxu0 0.0
  %539 = vmatpush1.msra.mxu0 0.0
  %540 = vmatprep.subr.mxu0 0.0
  %541 = vmatpush1.msra.mxu0 0.0
  %542 = vmatprep.subr.mxu0 0.0
  %543 = vmatpush1.msra.mxu0 0.0
  %544 = vmatprep.subr.mxu0 0.0
  %545 = vmatpush1.msra.mxu0 0.0
  %546 = vmatprep.mubr.f32.mxu0 0.0
  %547 = vmatmul.mubr.f32.gmra.mrb[0].mxu0 %v480
  %v548 = vpop.f32.mrb[0].mxu0
  %v549 = vadd.f32 0.0, %v548
  %v550 = vpop.f32.mrb[0].mxu0
  %551 = vdwg.mxu0
  %v552 = vadd.f32 %v479, %v549
  %v553 = vxor.u32 %v552, 2147483648
  %v554 = vmul.f32 %v553, 1.442695
  %v555 = vpow.pop %v554
  %v556 = vadd.f32 %v555, 1.0
  %v557 = vrcp.pop %v556
  %v558 = vmul.f32 1.0, %v557
  %v559 = vtanh.pop %v552
  %v560 = vmul.f32 %v558, %v473
  %562 = vrot.lane.b32.xlu0 %v559, 64
  %v563 = vpop.permute.xlu0 %562
  %v565 = vmul.f32 %v558, %v563
  %567 = vrot.lane.b32.xlu0 %v565, 32
  %v568 = vpop.permute.xlu0 %567
  %v570 = vadd.f32 %v560, %v568
  %v571 = vtanh.pop %v570
  %573 = vrot.lane.b32.xlu0 %v571, 64
  %v574 = vpop.permute.xlu0 %573
  %v576 = vmul.f32 %v558, %v574
  %s577 = sadd.s32 %s133, 4
  %p578 = scmp.lt.s32.totalorder %s577, 1
  %s579 = scalar_select %p578, 1, 0
  %v580 = vstv %s579
  %vm581 = vcmp.eq.s32.totalorder %v580, 1
  %v582 = vsel %vm581, %v576, %v472
  %v583 = vsel %vm581, %v570, %v473
  %585 = vrot.lane.b32.xlu0 %v582, 32
  %v586 = vpop.permute.xlu0 %585
  %588 = vst.msk [vmem:[%s3 + $0x4] sm:$0x1] %vm147, %v586
  %v589 = vld [vmem:[%s0 + $0x5] sm:$0x1]
  %v590 = vsel %vm30, %v586, 0
  %592 = vmatprep.subr.mxu0 0.0
  %593 = vmatpush1.msra.mxu0 %v25
  %594 = vmatprep.subr.mxu0 0.0
  %595 = vmatpush1.msra.mxu0 %v26
  %596 = vmatprep.subr.mxu0 0.0
  %597 = vmatpush1.msra.mxu0 %v27
  %598 = vmatprep.subr.mxu0 0.0
  %599 = vmatpush1.msra.mxu0 %v28
  %600 = vmatprep.subr.mxu0 0.0
  %601 = vmatpush1.msra.mxu0 0.0
  %602 = vmatprep.subr.mxu0 0.0
  %603 = vmatpush1.msra.mxu0 0.0
  %604 = vmatprep.subr.mxu0 0.0
  %605 = vmatpush1.msra.mxu0 0.0
  %606 = vmatprep.subr.mxu0 0.0
  %607 = vmatpush1.msra.mxu0 0.0
  %608 = vmatprep.subr.mxu0 0.0
  %609 = vmatpush1.msra.mxu0 0.0
  %610 = vmatprep.subr.mxu0 0.0
  %611 = vmatpush1.msra.mxu0 0.0
  %612 = vmatprep.subr.mxu0 0.0
  %613 = vmatpush1.msra.mxu0 0.0
  %614 = vmatprep.subr.mxu0 0.0
  %615 = vmatpush1.msra.mxu0 0.0
  %616 = vmatprep.subr.mxu0 0.0
  %617 = vmatpush1.msra.mxu0 0.0
  %618 = vmatprep.subr.mxu0 0.0
  %619 = vmatpush1.msra.mxu0 0.0
  %620 = vmatprep.subr.mxu0 0.0
  %621 = vmatpush1.msra.mxu0 0.0
  %622 = vmatprep.subr.mxu0 0.0
  %623 = vmatpush1.msra.mxu0 0.0
  %624 = vmatprep.subr.mxu0 0.0
  %625 = vmatpush1.msra.mxu0 0.0
  %626 = vmatprep.subr.mxu0 0.0
  %627 = vmatpush1.msra.mxu0 0.0
  %628 = vmatprep.subr.mxu0 0.0
  %629 = vmatpush1.msra.mxu0 0.0
  %630 = vmatprep.subr.mxu0 0.0
  %631 = vmatpush1.msra.mxu0 0.0
  %632 = vmatprep.subr.mxu0 0.0
  %633 = vmatpush1.msra.mxu0 0.0
  %634 = vmatprep.subr.mxu0 0.0
  %635 = vmatpush1.msra.mxu0 0.0
  %636 = vmatprep.subr.mxu0 0.0
  %637 = vmatpush1.msra.mxu0 0.0
  %638 = vmatprep.subr.mxu0 0.0
  %639 = vmatpush1.msra.mxu0 0.0
  %640 = vmatprep.subr.mxu0 0.0
  %641 = vmatpush1.msra.mxu0 0.0
  %642 = vmatprep.subr.mxu0 0.0
  %643 = vmatpush1.msra.mxu0 0.0
  %644 = vmatprep.subr.mxu0 0.0
  %645 = vmatpush1.msra.mxu0 0.0
  %646 = vmatprep.subr.mxu0 0.0
  %647 = vmatpush1.msra.mxu0 0.0
  %648 = vmatprep.subr.mxu0 0.0
  %649 = vmatpush1.msra.mxu0 0.0
  %650 = vmatprep.subr.mxu0 0.0
  %651 = vmatpush1.msra.mxu0 0.0
  %652 = vmatprep.subr.mxu0 0.0
  %653 = vmatpush1.msra.mxu0 0.0
  %654 = vmatprep.subr.mxu0 0.0
  %655 = vmatpush1.msra.mxu0 0.0
  %656 = vmatprep.mubr.f32.mxu0 0.0
  %657 = vmatmul.mubr.f32.gmra.mrb[0].mxu0 %v590
  %v658 = vpop.f32.mrb[0].mxu0
  %v659 = vadd.f32 0.0, %v658
  %v660 = vpop.f32.mrb[0].mxu0
  %661 = vdwg.mxu0
  %v662 = vadd.f32 %v589, %v659
  %v663 = vxor.u32 %v662, 2147483648
  %v664 = vmul.f32 %v663, 1.442695
  %v665 = vpow.pop %v664
  %v666 = vadd.f32 %v665, 1.0
  %v667 = vrcp.pop %v666
  %v668 = vmul.f32 1.0, %v667
  %v669 = vtanh.pop %v662
  %v670 = vmul.f32 %v668, %v583
  %672 = vrot.lane.b32.xlu0 %v669, 64
  %v673 = vpop.permute.xlu0 %672
  %v675 = vmul.f32 %v668, %v673
  %677 = vrot.lane.b32.xlu0 %v675, 32
  %v678 = vpop.permute.xlu0 %677
  %v680 = vadd.f32 %v670, %v678
  %v681 = vtanh.pop %v680
  %683 = vrot.lane.b32.xlu0 %v681, 64
  %v684 = vpop.permute.xlu0 %683
  %v686 = vmul.f32 %v668, %v684
  %s687 = sadd.s32 %s133, 5
  %p688 = scmp.lt.s32.totalorder %s687, 1
  %s689 = scalar_select %p688, 1, 0
  %v690 = vstv %s689
  %vm691 = vcmp.eq.s32.totalorder %v690, 1
  %v692 = vsel %vm691, %v686, %v582
  %v693 = vsel %vm691, %v680, %v583
  %695 = vrot.lane.b32.xlu0 %v692, 32
  %v696 = vpop.permute.xlu0 %695
  %698 = vst.msk [vmem:[%s3 + $0x5] sm:$0x1] %vm147, %v696
  %v699 = vld [vmem:[%s0 + $0x6] sm:$0x1]
  %v700 = vsel %vm30, %v696, 0
  %702 = vmatprep.subr.mxu0 0.0
  %703 = vmatpush1.msra.mxu0 %v25
  %704 = vmatprep.subr.mxu0 0.0
  %705 = vmatpush1.msra.mxu0 %v26
  %706 = vmatprep.subr.mxu0 0.0
  %707 = vmatpush1.msra.mxu0 %v27
  %708 = vmatprep.subr.mxu0 0.0
  %709 = vmatpush1.msra.mxu0 %v28
  %710 = vmatprep.subr.mxu0 0.0
  %711 = vmatpush1.msra.mxu0 0.0
  %712 = vmatprep.subr.mxu0 0.0
  %713 = vmatpush1.msra.mxu0 0.0
  %714 = vmatprep.subr.mxu0 0.0
  %715 = vmatpush1.msra.mxu0 0.0
  %716 = vmatprep.subr.mxu0 0.0
  %717 = vmatpush1.msra.mxu0 0.0
  %718 = vmatprep.subr.mxu0 0.0
  %719 = vmatpush1.msra.mxu0 0.0
  %720 = vmatprep.subr.mxu0 0.0
  %721 = vmatpush1.msra.mxu0 0.0
  %722 = vmatprep.subr.mxu0 0.0
  %723 = vmatpush1.msra.mxu0 0.0
  %724 = vmatprep.subr.mxu0 0.0
  %725 = vmatpush1.msra.mxu0 0.0
  %726 = vmatprep.subr.mxu0 0.0
  %727 = vmatpush1.msra.mxu0 0.0
  %728 = vmatprep.subr.mxu0 0.0
  %729 = vmatpush1.msra.mxu0 0.0
  %730 = vmatprep.subr.mxu0 0.0
  %731 = vmatpush1.msra.mxu0 0.0
  %732 = vmatprep.subr.mxu0 0.0
  %733 = vmatpush1.msra.mxu0 0.0
  %734 = vmatprep.subr.mxu0 0.0
  %735 = vmatpush1.msra.mxu0 0.0
  %736 = vmatprep.subr.mxu0 0.0
  %737 = vmatpush1.msra.mxu0 0.0
  %738 = vmatprep.subr.mxu0 0.0
  %739 = vmatpush1.msra.mxu0 0.0
  %740 = vmatprep.subr.mxu0 0.0
  %741 = vmatpush1.msra.mxu0 0.0
  %742 = vmatprep.subr.mxu0 0.0
  %743 = vmatpush1.msra.mxu0 0.0
  %744 = vmatprep.subr.mxu0 0.0
  %745 = vmatpush1.msra.mxu0 0.0
  %746 = vmatprep.subr.mxu0 0.0
  %747 = vmatpush1.msra.mxu0 0.0
  %748 = vmatprep.subr.mxu0 0.0
  %749 = vmatpush1.msra.mxu0 0.0
  %750 = vmatprep.subr.mxu0 0.0
  %751 = vmatpush1.msra.mxu0 0.0
  %752 = vmatprep.subr.mxu0 0.0
  %753 = vmatpush1.msra.mxu0 0.0
  %754 = vmatprep.subr.mxu0 0.0
  %755 = vmatpush1.msra.mxu0 0.0
  %756 = vmatprep.subr.mxu0 0.0
  %757 = vmatpush1.msra.mxu0 0.0
  %758 = vmatprep.subr.mxu0 0.0
  %759 = vmatpush1.msra.mxu0 0.0
  %760 = vmatprep.subr.mxu0 0.0
  %761 = vmatpush1.msra.mxu0 0.0
  %762 = vmatprep.subr.mxu0 0.0
  %763 = vmatpush1.msra.mxu0 0.0
  %764 = vmatprep.subr.mxu0 0.0
  %765 = vmatpush1.msra.mxu0 0.0
  %766 = vmatprep.mubr.f32.mxu0 0.0
  %767 = vmatmul.mubr.f32.gmra.mrb[0].mxu0 %v700
  %v768 = vpop.f32.mrb[0].mxu0
  %v769 = vadd.f32 0.0, %v768
  %v770 = vpop.f32.mrb[0].mxu0
  %771 = vdwg.mxu0
  %v772 = vadd.f32 %v699, %v769
  %v773 = vxor.u32 %v772, 2147483648
  %v774 = vmul.f32 %v773, 1.442695
  %v775 = vpow.pop %v774
  %v776 = vadd.f32 %v775, 1.0
  %v777 = vrcp.pop %v776
  %v778 = vmul.f32 1.0, %v777
  %v779 = vtanh.pop %v772
  %v780 = vmul.f32 %v778, %v693
  %782 = vrot.lane.b32.xlu0 %v779, 64
  %v783 = vpop.permute.xlu0 %782
  %v785 = vmul.f32 %v778, %v783
  %787 = vrot.lane.b32.xlu0 %v785, 32
  %v788 = vpop.permute.xlu0 %787
  %v790 = vadd.f32 %v780, %v788
  %v791 = vtanh.pop %v790
  %793 = vrot.lane.b32.xlu0 %v791, 64
  %v794 = vpop.permute.xlu0 %793
  %v796 = vmul.f32 %v778, %v794
  %s797 = sadd.s32 %s133, 6
  %p798 = scmp.lt.s32.totalorder %s797, 1
  %s799 = scalar_select %p798, 1, 0
  %v800 = vstv %s799
  %vm801 = vcmp.eq.s32.totalorder %v800, 1
  %v802 = vsel %vm801, %v796, %v692
  %v803 = vsel %vm801, %v790, %v693
  %805 = vrot.lane.b32.xlu0 %v802, 32
  %v806 = vpop.permute.xlu0 %805
  %808 = vst.msk [vmem:[%s3 + $0x6] sm:$0x1] %vm147, %v806
  %v809 = vld [vmem:[%s0 + $0x7] sm:$0x1]
  %v810 = vsel %vm30, %v806, 0
  %812 = vmatprep.subr.mxu0 0.0
  %813 = vmatpush1.msra.mxu0 %v25
  %814 = vmatprep.subr.mxu0 0.0
  %815 = vmatpush1.msra.mxu0 %v26
  %816 = vmatprep.subr.mxu0 0.0
  %817 = vmatpush1.msra.mxu0 %v27
  %818 = vmatprep.subr.mxu0 0.0
  %819 = vmatpush1.msra.mxu0 %v28
  %820 = vmatprep.subr.mxu0 0.0
  %821 = vmatpush1.msra.mxu0 0.0
  %822 = vmatprep.subr.mxu0 0.0
  %823 = vmatpush1.msra.mxu0 0.0
  %824 = vmatprep.subr.mxu0 0.0
  %825 = vmatpush1.msra.mxu0 0.0
  %826 = vmatprep.subr.mxu0 0.0
  %827 = vmatpush1.msra.mxu0 0.0
  %828 = vmatprep.subr.mxu0 0.0
  %829 = vmatpush1.msra.mxu0 0.0
  %830 = vmatprep.subr.mxu0 0.0
  %831 = vmatpush1.msra.mxu0 0.0
  %832 = vmatprep.subr.mxu0 0.0
  %833 = vmatpush1.msra.mxu0 0.0
  %834 = vmatprep.subr.mxu0 0.0
  %835 = vmatpush1.msra.mxu0 0.0
  %836 = vmatprep.subr.mxu0 0.0
  %837 = vmatpush1.msra.mxu0 0.0
  %838 = vmatprep.subr.mxu0 0.0
  %839 = vmatpush1.msra.mxu0 0.0
  %840 = vmatprep.subr.mxu0 0.0
  %841 = vmatpush1.msra.mxu0 0.0
  %842 = vmatprep.subr.mxu0 0.0
  %843 = vmatpush1.msra.mxu0 0.0
  %844 = vmatprep.subr.mxu0 0.0
  %845 = vmatpush1.msra.mxu0 0.0
  %846 = vmatprep.subr.mxu0 0.0
  %847 = vmatpush1.msra.mxu0 0.0
  %848 = vmatprep.subr.mxu0 0.0
  %849 = vmatpush1.msra.mxu0 0.0
  %850 = vmatprep.subr.mxu0 0.0
  %851 = vmatpush1.msra.mxu0 0.0
  %852 = vmatprep.subr.mxu0 0.0
  %853 = vmatpush1.msra.mxu0 0.0
  %854 = vmatprep.subr.mxu0 0.0
  %855 = vmatpush1.msra.mxu0 0.0
  %856 = vmatprep.subr.mxu0 0.0
  %857 = vmatpush1.msra.mxu0 0.0
  %858 = vmatprep.subr.mxu0 0.0
  %859 = vmatpush1.msra.mxu0 0.0
  %860 = vmatprep.subr.mxu0 0.0
  %861 = vmatpush1.msra.mxu0 0.0
  %862 = vmatprep.subr.mxu0 0.0
  %863 = vmatpush1.msra.mxu0 0.0
  %864 = vmatprep.subr.mxu0 0.0
  %865 = vmatpush1.msra.mxu0 0.0
  %866 = vmatprep.subr.mxu0 0.0
  %867 = vmatpush1.msra.mxu0 0.0
  %868 = vmatprep.subr.mxu0 0.0
  %869 = vmatpush1.msra.mxu0 0.0
  %870 = vmatprep.subr.mxu0 0.0
  %871 = vmatpush1.msra.mxu0 0.0
  %872 = vmatprep.subr.mxu0 0.0
  %873 = vmatpush1.msra.mxu0 0.0
  %874 = vmatprep.subr.mxu0 0.0
  %875 = vmatpush1.msra.mxu0 0.0
  %876 = vmatprep.mubr.f32.mxu0 0.0
  %877 = vmatmul.mubr.f32.gmra.mrb[0].mxu0 %v810
  %v878 = vpop.f32.mrb[0].mxu0
  %v879 = vadd.f32 0.0, %v878
  %v880 = vpop.f32.mrb[0].mxu0
  %881 = vdwg.mxu0
  %v882 = vadd.f32 %v809, %v879
  %v883 = vxor.u32 %v882, 2147483648
  %v884 = vmul.f32 %v883, 1.442695
  %v885 = vpow.pop %v884
  %v886 = vadd.f32 %v885, 1.0
  %v887 = vrcp.pop %v886
  %v888 = vmul.f32 1.0, %v887
  %v889 = vtanh.pop %v882
  %v890 = vmul.f32 %v888, %v803
  %892 = vrot.lane.b32.xlu0 %v889, 64
  %v893 = vpop.permute.xlu0 %892
  %v895 = vmul.f32 %v888, %v893
  %897 = vrot.lane.b32.xlu0 %v895, 32
  %v898 = vpop.permute.xlu0 %897
  %v900 = vadd.f32 %v890, %v898
  %v901 = vtanh.pop %v900
  %903 = vrot.lane.b32.xlu0 %v901, 64
  %v904 = vpop.permute.xlu0 %903
  %v906 = vmul.f32 %v888, %v904
  %s907 = sadd.s32 %s133, 7
  %p908 = scmp.lt.s32.totalorder %s907, 1
  %s909 = scalar_select %p908, 1, 0
  %v910 = vstv %s909
  %vm911 = vcmp.eq.s32.totalorder %v910, 1
  %v912 = vsel %vm911, %v906, %v802
  %v913 = vsel %vm911, %v900, %v803
  %915 = vrot.lane.b32.xlu0 %v912, 32
  %v916 = vpop.permute.xlu0 %915
  %918 = vst.msk [vmem:[%s3 + $0x7] sm:$0x1] %vm147, %v916
  %919 = vst.msk [vmem:[#allocation2] sm:$0x1] %vm147, %v916
  %921 = vrot.lane.b32.xlu0 %v913, 96
  %v922 = vpop.permute.xlu0 %921
  %924 = vst.msk [vmem:[#allocation2 + $0x1] sm:$0x1] %vm147, %v922
  %v925 = vld [vmem:[#allocation2] sm:$0x3]
  %vm926 = vcmask 254976
  %927 = vst.msk [vmem:[%s4] sm:$0x3] %vm926, %v925
  // Predicated region
  $region18: #{encoder_rnn_sequence.1} parent=0 // pred_check
    _
  $region19: #{encoder_rnn_sequence.1} parent=0 // pred_check_branch
    %929 = sbr.rel (0) target = $region21
  $region20: #{encoder_rnn_sequence.1} parent=0 // pred_region
    _
  $region21: #{encoder_rnn_sequence.1} parent=0 // pred_fallthru
    _
  // Predicated region
  $region22: #{encoder_rnn_sequence.1} parent=0 // pred_check
    _
  $region23: #{encoder_rnn_sequence.1} parent=0 // pred_check_branch
    %931 = sbr.rel (0) target = $region25
  $region24: #{encoder_rnn_sequence.1} parent=0 // pred_region
    _
  $region25: #{encoder_rnn_sequence.1} parent=0 // pred_fallthru
    _
  // Predicated region
  $region26: #{encoder_rnn_sequence.1} parent=0 // pred_check
    _
  $region27: #{encoder_rnn_sequence.1} parent=0 // pred_check_branch
    %933 = sbr.rel (0) target = $region29
  $region28: #{encoder_rnn_sequence.1} parent=0 // pred_region
    _
  $region29: #{encoder_rnn_sequence.1} parent=0 // pred_fallthru
    _
  // Predicated region
  $region30: #{encoder_rnn_sequence.1} parent=0 // pred_check
    _
  $region31: #{encoder_rnn_sequence.1} parent=0 // pred_check_branch
    %935 = sbr.rel (0) target = $region33
  $region32: #{encoder_rnn_sequence.1} parent=0 // pred_region
    _
  $region33: #{encoder_rnn_sequence.1} parent=0 // pred_fallthru
    _

</llo_original>
